<compile_context>
chip_gen: v6e
topology: v6e:2x2x1
jax: 0.10.0
libtpu: 0.0.40
codegen_flags: <defaults>
</compile_context>

<pallas_src>
import functools

import jax
import jax.numpy as jnp
from jax.experimental import pallas as pl
from jax.experimental.pallas import tpu as pltpu

BN_EPS = 1e-5
_LANE = 128
_SUBLANE = 8


def _ceil_to(x, m):
    return (x + m - 1) // m * m


# --------------------------------------------------------------------------- #
# Kernels
# --------------------------------------------------------------------------- #
def _pool_linear_single_kernel(x_ref, w_ref, b_ref, o_ref):
    """Grid = (ceil(N/TN),).  Whole spatial extent in one lane-dense block.

    x_ref: (TN, C, HW)   w_ref: (C, O) pre-scaled by 1/HW   b_ref: (1, O)
    o_ref: (TN, O)
    """
    pooled = jnp.sum(x_ref[...], axis=-1, dtype=jnp.float32)        # (TN, C)
    o_ref[...] = (jnp.dot(pooled, w_ref[...],
                          preferred_element_type=jnp.float32)
                  + b_ref[...]).astype(o_ref.dtype)


def _pool_linear_kernel(hw, thw, needs_mask, x_ref, w_ref, b_ref, o_ref,
                        acc_ref):
    """Grid = (ceil(N/TN), ceil(HW/THW)).

    x_ref: (TN, C, THW)   w_ref: (C, O) pre-scaled by 1/HW   b_ref: (1, O)
    o_ref: (TN, O)        acc_ref: (TN, C) f32 spatial-sum accumulator
    """
    k = pl.program_id(1)

    @pl.when(k == 0)
    def _init():
        acc_ref[...] = jnp.zeros_like(acc_ref)

    x = x_ref[...]
    if needs_mask:
        # Ragged spatial tail: zero out lanes past the true HW extent.
        # (The mask is all-true on every non-last block, so it is safe and
        # cheap to apply unconditionally.)
        lane = jax.lax.broadcasted_iota(jnp.int32, x.shape, x.ndim - 1)
        x = jnp.where(k * thw + lane < hw, x, jnp.zeros_like(x))
    acc_ref[...] += jnp.sum(x, axis=-1, dtype=jnp.float32)

    @pl.when(k == pl.num_programs(1) - 1)
    def _finalize():
        o_ref[...] = (jnp.dot(acc_ref[...], w_ref[...],
                              preferred_element_type=jnp.float32)
                      + b_ref[...]).astype(o_ref.dtype)


def _linear_kernel(x_ref, w_ref, b_ref, o_ref):
    """2D path: fused Linear(+BN) on a (TN, C) tile (no pooling)."""
    o_ref[...] = (jnp.dot(x_ref[...].astype(jnp.float32), w_ref[...],
                          preferred_element_type=jnp.float32)
                  + b_ref[...]).astype(o_ref.dtype)


# --------------------------------------------------------------------------- #
# Tiling helpers
# --------------------------------------------------------------------------- #
def _vmem_budgets():
    """(double-buffered x-tile budget, vmem_limit cap), generation-aware."""
    try:
        cap = int(pltpu.get_tpu_info().vmem_capacity_bytes)
    except Exception:
        cap = 0
    if cap > 64 * 1024 * 1024:          # v5e / v6e: 128 MiB physical VMEM
        return 40 * 1024 * 1024, 80 * 1024 * 1024
    # v7x (64 MiB/TC) or unknown: conservative, leave headroom for resident
    # params, output buffers, accumulator scratch and Mosaic internal scratch.
    return 20 * 1024 * 1024, 40 * 1024 * 1024


def _choose_tn(n):
    """Batch tile: multiple of 8 (or full N when N <= 8); guarantee >= 2 N
    blocks whenever N allows so the 'parallel' axis can shard across v7x's
    two TensorCores."""
    if n <= 8:
        return n
    for t in (128, 64, 32, 16, 8):
        if t <= n and pl.cdiv(n, t) >= 2:
            return t
    return 8


def _padded_x_tile_bytes(tn, c, thw, itemsize):
    """VMEM bytes of one (TN, C, THW) buffer incl. sublane/lane padding."""
    return tn * _ceil_to(c, _SUBLANE) * _ceil_to(thw, _LANE) * itemsize


def _choose_tiles(n, c, hw, itemsize, x_budget):
    """Jointly pick (TN, THW) so the double-buffered x tile fits x_budget.
    Shrink TN first (keep >= 8), then THW (multiples of 128, lane-fat)."""
    tn = _choose_tn(n)
    thw = min(hw, 2048)                 # roofline gains flatten past ~1-2K lanes

    def db(tn_, thw_):
        return 2 * _padded_x_tile_bytes(tn_, c, thw_, itemsize)

    while tn > 8 and db(tn, thw) > x_budget:
        tn = max(8, tn // 2)
    while thw > _LANE and db(tn, thw) > x_budget:
        thw = max(_LANE, (thw // 2) // _LANE * _LANE)
    return tn, thw


# --------------------------------------------------------------------------- #
# Forward
# --------------------------------------------------------------------------- #
def _linear_forward(x, w_f, b_f):
    n, c = x.shape
    out_dim = w_f.shape[1]
    tn = _choose_tn(n)
    return pl.pallas_call(
        _linear_kernel,
        out_shape=jax.ShapeDtypeStruct((n, out_dim), jnp.float32),
        grid_spec=pltpu.PrefetchScalarGridSpec(
            num_scalar_prefetch=0,
            grid=(pl.cdiv(n, tn),),
            in_specs=[
                pl.BlockSpec((tn, c), lambda i: (i, 0)),
                pl.BlockSpec(w_f.shape, lambda i: (0, 0)),       # resident
                pl.BlockSpec(b_f.shape, lambda i: (0, 0)),       # resident
            ],
            out_specs=pl.BlockSpec((tn, out_dim), lambda i: (i, 0)),
        ),
        compiler_params=pltpu.CompilerParams(
            dimension_semantics=("parallel",)),
    )(x, w_f, b_f)


def _pooled_forward(x, w_f, b_f):
    n, c, h, w = x.shape
    hw = h * w
    out_dim = w_f.shape[1]
    x3 = x.reshape(n, c, hw)                       # no dtype promotion, no pad
    itemsize = x3.dtype.itemsize

    x_budget, vmem_cap = _vmem_budgets()
    tn, thw = _choose_tiles(n, c, hw, itemsize, x_budget)

    # Fold the 1/HW pooling scale into the weights (tiny (C, O) XLA op; the
    # matmul absorbs the scale with identical numerics).
    w_s = (w_f * (1.0 / float(hw))).astype(jnp.float32)

    x_tile = _padded_x_tile_bytes(tn, c, thw, itemsize)
    vmem_limit = int(min(vmem_cap,
                         max(8 * 1024 * 1024, 2 * x_tile + 4 * 1024 * 1024)))

    cost = pl.CostEstimate(
        flops=int(2 * n * c * out_dim + n * c * hw),
        transcendentals=0,
        bytes_accessed=int(n * c * hw * itemsize
                           + (w_s.size + b_f.size) * 4 + n * out_dim * 4),
    )

    n_blocks = pl.cdiv(n, tn)
    hw_blocks = pl.cdiv(hw, thw)

    if hw_blocks == 1:
        # Single spatial step: drop the reduction axis and the acc scratch.
        return pl.pallas_call(
            _pool_linear_single_kernel,
            out_shape=jax.ShapeDtypeStruct((n, out_dim), jnp.float32),
            grid_spec=pltpu.PrefetchScalarGridSpec(
                num_scalar_prefetch=0,
                grid=(n_blocks,),
                in_specs=[
                    pl.BlockSpec((tn, c, hw), lambda i: (i, 0, 0)),
                    pl.BlockSpec(w_s.shape, lambda i: (0, 0)),   # resident
                    pl.BlockSpec(b_f.shape, lambda i: (0, 0)),   # resident
                ],
                out_specs=pl.BlockSpec((tn, out_dim), lambda i: (i, 0)),
            ),
            compiler_params=pltpu.CompilerParams(
                dimension_semantics=("parallel",),
                vmem_limit_bytes=vmem_limit),
            cost_estimate=cost,
        )(x3, w_s, b_f)

    needs_mask = (hw % thw) != 0
    kernel = functools.partial(_pool_linear_kernel, hw, thw, needs_mask)
    return pl.pallas_call(
        kernel,
        out_shape=jax.ShapeDtypeStruct((n, out_dim), jnp.float32),
        grid_spec=pltpu.PrefetchScalarGridSpec(
            num_scalar_prefetch=0,
            grid=(n_blocks, hw_blocks),
            in_specs=[
                pl.BlockSpec((tn, c, thw), lambda i, k: (i, 0, k)),
                pl.BlockSpec(w_s.shape, lambda i, k: (0, 0)),    # resident
                pl.BlockSpec(b_f.shape, lambda i, k: (0, 0)),    # resident
            ],
            out_specs=pl.BlockSpec((tn, out_dim), lambda i, k: (i, 0)),
            scratch_shapes=[pltpu.VMEM((tn, c), jnp.float32)],
        ),
        compiler_params=pltpu.CompilerParams(
            dimension_semantics=("parallel", "arbitrary"),
            vmem_limit_bytes=vmem_limit),
        cost_estimate=cost,
    )(x3, w_s, b_f)


def bbox_regressor_forward(x, fused_params):
    """x: (N, C, H, W) or (N, C).  Returns (N, 4*num_classes) float32."""
    w_f, b_f = fused_params
    if x.ndim == 4:
        n, c, h, w = x.shape
        if h * w == 1:
            x = x.reshape(n, c)       # already pooled; no reduction needed
        else:
            return _pooled_forward(x, w_f, b_f)
    if x.ndim != 2:
        raise ValueError("expected 2D or 4D input")
    return _linear_forward(x, w_f, b_f)


# --------------------------------------------------------------------------- #
# Parameters
# --------------------------------------------------------------------------- #
def init_params(key, in_channels, num_classes=2, bn_neck=True):
    """Raw parameters matching the PyTorch module's initialization."""
    out_dim = 4 * num_classes
    k_lin, k_bn = jax.random.split(key)
    # nn.Linear: weight ~ N(0, 0.01) (PyTorch layout (O, C)), bias = 0.
    w = (0.01 * jax.random.normal(k_lin, (out_dim, in_channels))).astype(jnp.float32)
    b = jnp.zeros((out_dim,), jnp.float32)
    params = {"w": w, "b": b}
    if bn_neck:
        # nn.BatchNorm1d: weight ~ N(0, 0.01), bias = 0, default running stats.
        params["gamma"] = (0.01 * jax.random.normal(k_bn, (out_dim,))).astype(jnp.float32)
        params["beta"] = jnp.zeros((out_dim,), jnp.float32)
        params["running_mean"] = jnp.zeros((out_dim,), jnp.float32)
        params["running_var"] = jnp.ones((out_dim,), jnp.float32)
    return params


def prepare_params(raw):
    """Fold eval-mode BatchNorm1d into the Linear weights (done once, offline)."""
    w_t = raw["w"].T                                             # (C, O)
    b = raw["b"]
    if "gamma" in raw:
        scale = raw["gamma"] * jax.lax.rsqrt(raw["running_var"] + BN_EPS)   # (O,)
        w_f = w_t * scale[None, :]
        b_f = (b - raw["running_mean"]) * scale + raw["beta"]
    else:
        w_f, b_f = w_t, b
    return (w_f.astype(jnp.float32), b_f.reshape(1, -1).astype(jnp.float32))


# --------------------------------------------------------------------------- #
# Test
# --------------------------------------------------------------------------- #
def _reference(x, raw):
    x = x.astype(jnp.float32)
    if x.ndim == 4:
        x = jnp.mean(x, axis=(2, 3))
    lin = x @ raw["w"].T + raw["b"]
    if "gamma" in raw:
        lin = ((lin - raw["running_mean"])
               * jax.lax.rsqrt(raw["running_var"] + BN_EPS)
               * raw["gamma"] + raw["beta"])
    return lin


if __name__ == "__main__":
    key = jax.random.PRNGKey(0)
    k_x, k_p, k_x2, k_x3 = jax.random.split(key, 4)
    num_classes = 2

    # 1) 4D path, single spatial block (pool + Linear + BN).
    N, C, H, W = 2, 4, 16, 16
    x = jax.random.normal(k_x, (N, C, H, W), dtype=jnp.float32)
    raw = init_params(k_p, in_channels=C, num_classes=num_classes)
    fused = prepare_params(raw)
    out = jax.block_until_ready(bbox_regressor_forward(x, fused))
    assert out.shape == (N, 4 * num_classes)
    assert jnp.allclose(out, _reference(x, raw), atol=1e-6, rtol=1e-5)

    # 2) 2D path (input already flattened to (N, C)).
    x2d = jax.random.normal(k_x2, (N, C), dtype=jnp.float32)
    out2 = jax.block_until_ready(bbox_regressor_forward(x2d, fused))
    assert jnp.allclose(out2, _reference(x2d, raw), atol=1e-6, rtol=1e-5)

    # 3) 4D path, multi-step spatial reduction with ragged N and ragged HW
    #    (exercises the ceil grid + in-kernel tail mask; no wrapper padding).
    N3, C3, H3, W3 = 10, 8, 48, 48               # HW = 2304 -> blocks of 2048
    x3 = jax.random.normal(k_x3, (N3, C3, H3, W3), dtype=jnp.float32)
    raw3 = init_params(k_p, in_channels=C3, num_classes=num_classes)
    fused3 = prepare_params(raw3)
    out3 = jax.block_until_ready(bbox_regressor_forward(x3, fused3))
    assert out3.shape == (N3, 4 * num_classes)
    assert jnp.allclose(out3, _reference(x3, raw3), atol=1e-6, rtol=1e-5)

    print("KERNEL_OK")
</pallas_src>

<mosaic_0001>
module attributes {stable_mosaic.version = 11 : i64} {
  func.func @_pool_linear_single_kernel(%arg0: i32, %arg1: memref<2x4x256xf32, #tpu.memory_space<vmem>>, %arg2: memref<4x8xf32, #tpu.memory_space<vmem>>, %arg3: memref<1x8xf32, #tpu.memory_space<vmem>>, %arg4: memref<2x8xf32, #tpu.memory_space<vmem>>) attributes {dimension_semantics = [#tpu.dimension_semantics<parallel>], iteration_bounds = array<i64: 1>, scalar_prefetch = 0 : i64, scratch_operands = 0 : i64, tpu.core_type = #tpu.core_type<tc>, window_params = [{transform_indices = @transform_0, window_bounds = array<i64: 2, 4, 256>}, {pipeline_mode = #tpu.pipeline_mode<synchronous>, transform_indices = @transform_1, window_bounds = array<i64: 4, 8>}, {pipeline_mode = #tpu.pipeline_mode<synchronous>, transform_indices = @transform_2, window_bounds = array<i64: 1, 8>}, {transform_indices = @transform_3, window_bounds = array<i64: 2, 8>}]} {
    %c0 = arith.constant 0 : index
    %c0_0 = arith.constant 0 : index
    %c0_1 = arith.constant 0 : index
    %0 = vector.load %arg1[%c0, %c0_0, %c0_1] : memref<2x4x256xf32, #tpu.memory_space<vmem>>, vector<2x4x256xf32>
    %cst = arith.constant dense<0.000000e+00> : vector<2x4xf32>
    %1 = vector.multi_reduction <add>, %0, %cst [2] : vector<2x4x256xf32> to vector<2x4xf32>
    %c0_2 = arith.constant 0 : index
    %c0_3 = arith.constant 0 : index
    %2 = vector.load %arg2[%c0_2, %c0_3] : memref<4x8xf32, #tpu.memory_space<vmem>>, vector<4x8xf32>
    %cst_4 = arith.constant dense<0.000000e+00> : vector<2x8xf32>
    %3 = tpu.matmul %1, %2, %cst_4 {dimension_numbers = #tpu.dot_dimension_numbers<[1], [0], [0], [1], [0, 0, 1, 1], [], []>} : vector<2x4xf32>, vector<4x8xf32>, vector<2x8xf32> -> vector<2x8xf32>
    %c0_5 = arith.constant 0 : index
    %c0_6 = arith.constant 0 : index
    %4 = vector.load %arg3[%c0_5, %c0_6] : memref<1x8xf32, #tpu.memory_space<vmem>>, vector<1x8xf32>
    %5 = vector.broadcast %4 : vector<1x8xf32> to vector<2x8xf32>
    %6 = arith.addf %3, %5 : vector<2x8xf32>
    %c0_7 = arith.constant 0 : index
    %c0_8 = arith.constant 0 : index
    %7 = vector.load %arg4[%c0_7, %c0_8] : memref<2x8xf32, #tpu.memory_space<vmem>>, vector<2x8xf32>
    tpu.vector_store %arg4[%c0_7, %c0_8], %6 {strides = array<i32>} : memref<2x8xf32, #tpu.memory_space<vmem>>, vector<2x8xf32>,
    return
  }
  func.func @transform_0(%arg0: i32) -> (i32, i32, i32) {
    %c0_i32 = arith.constant 0 : i32
    %c0_i32_0 = arith.constant 0 : i32
    %c0_i32_1 = arith.constant 0 : i32
    return %arg0, %c0_i32, %c0_i32_0 : i32, i32, i32
  }
  func.func @transform_1(%arg0: i32) -> (i32, i32) {
    %c0_i32 = arith.constant 0 : i32
    %c0_i32_0 = arith.constant 0 : i32
    %c0_i32_1 = arith.constant 0 : i32
    return %c0_i32, %c0_i32_0 : i32, i32
  }
  func.func @transform_2(%arg0: i32) -> (i32, i32) {
    %c0_i32 = arith.constant 0 : i32
    %c0_i32_0 = arith.constant 0 : i32
    %c0_i32_1 = arith.constant 0 : i32
    return %c0_i32, %c0_i32_0 : i32, i32
  }
  func.func @transform_3(%arg0: i32) -> (i32, i32) {
    %c0_i32 = arith.constant 0 : i32
    %c0_i32_0 = arith.constant 0 : i32
    return %arg0, %c0_i32 : i32, i32
  }
}

</mosaic_0001>

<llo_original>
// kernel: tpu_custom_call.1
$region0: #{tpu_custom_call.1}
  #allocation0 [shape = 'u32[]', space=smem, size = 0x4, offset = 0x4, fixed_abs, tag = 'smem constant byte address 0x4 - core index']
  #allocation1 [shape = 'u32[144,128]{1,0:T(1,128)}', space=vmem, size = 0x12000, scoped, tag = 'internal scratch']
  %s0 = inlined_call_operand.hbm [shape: f32[2,4,256], index: 0, kind: input, shape index: {}]
  %s1 = inlined_call_operand.hbm [shape: f32[4,8], index: 1, kind: input, shape index: {}]
  %s2 = inlined_call_operand.vmem [shape: f32[1,8], index: 2, kind: input, shape index: {}]
  %s3 = inlined_call_operand.hbm [shape: f32[2,8], index: 3, kind: output, shape index: {}]
  %s4 = sld [smem:[#allocation0]]
  $region30: #{tpu_custom_call.1} parent=0
    _
  %s6 = ssub.s32 1, %s4
  %s7 = scalar_select 0, %s6, %s4
  $region1: #{tpu_custom_call.1} parent=0
    #allocation2 [shape = 'u8[8192]{0}', space=vmem, size = 0x2000, scoped, tag = 'input window, operand 0, single buffered']
    #allocation3 [shape = 's32[1]{0}', space=sflag, size = 0x4, scoped, tag = 'scoped memory for tpu_custom_call.1']
    #allocation4 [shape = 's32[1]{0}', space=sflag, size = 0x4, scoped, tag = 'scoped memory for tpu_custom_call.1']
    #allocation5 [shape = 'u8[2048]{0}', space=vmem, size = 0x800, scoped, tag = 'input window, operand 1, single buffered']
    #allocation6 [shape = 's32[1]{0}', space=sflag, size = 0x4, scoped, tag = 'scoped memory for tpu_custom_call.1']
    #allocation7 [shape = 'u8[1024]{0}', space=vmem, size = 0x400, scoped, tag = 'output window, operand 0, single buffered']
    %8 = vsyncpa [#allocation3], 0
    %9 = vsyncpa [#allocation6], 0
    %10 = vsyncpa [#allocation4], 0
    // Predicated region
    $region2: #{tpu_custom_call.1} parent=1 // pred_check
      _
    $region3: #{tpu_custom_call.1} parent=1 // pred_check_branch
      %12 = sbr.rel (0) target = $region5
    $region4: #{tpu_custom_call.1} parent=1 // pred_region
      %s14 = ssub.s32 256, 256
      %15 = vsyncadd [#allocation3], %s14
      %s16 = sshll.u32 [#allocation2], 4
      %s17 = int_to_ptr.vmem [resolvable:$true] %s16
      %22 = dma.hbm_to_vmem [thread:$0]  %s0, 256, %s17, [#allocation3], 128, 128, 8
    $region5: #{tpu_custom_call.1} parent=1 // pred_fallthru
      _
    // Predicated region
    $region6: #{tpu_custom_call.1} parent=1 // pred_check
      _
    $region7: #{tpu_custom_call.1} parent=1 // pred_check_branch
      %24 = sbr.rel (0) target = $region9
    $region8: #{tpu_custom_call.1} parent=1 // pred_region
      %s26 = ssub.s32 64, 64
      %27 = vsyncadd [#allocation6], %s26
      %s29 = sshll.u32 [#allocation5], 4
      %s30 = int_to_ptr.vmem [resolvable:$true] %s29
      %32 = dma.hbm_to_vmem [thread:$0]  %s1, 64, %s30, [#allocation6]
    $region9: #{tpu_custom_call.1} parent=1 // pred_fallthru
      _
    // Predicated region
    $region10: #{tpu_custom_call.1} parent=1 // pred_check
      _
    $region11: #{tpu_custom_call.1} parent=1 // pred_check_branch
      %34 = sbr.rel (0) target = $region13
    $region12: #{tpu_custom_call.1} parent=1 // pred_region
      _
    $region13: #{tpu_custom_call.1} parent=1 // pred_fallthru
      _
    // Predicated region
    $region14: #{tpu_custom_call.1} parent=1 // pred_check
      _
    $region15: #{tpu_custom_call.1} parent=1 // pred_check_branch
      %36 = sbr.rel (0) target = $region17
    $region16: #{tpu_custom_call.1} parent=1 // pred_region
      %37 = dma.done [#allocation3], 256
    $region17: #{tpu_custom_call.1} parent=1 // pred_fallthru
      _
    // Predicated region
    $region18: #{tpu_custom_call.1} parent=1 // pred_check
      _
    $region19: #{tpu_custom_call.1} parent=1 // pred_check_branch
      %39 = sbr.rel (0) target = $region21
    $region20: #{tpu_custom_call.1} parent=1 // pred_region
      %40 = dma.done [#allocation6], 64
    $region21: #{tpu_custom_call.1} parent=1 // pred_fallthru
      _
    %v41 = vld [vmem:[#allocation2] sm:$0xff]
    %v42 = vld [vmem:[#allocation2 + $0x8] sm:$0xff]
    %v45 = vcombine.high %v41, %v41
    %v46 = vcombine.high %v42, %v42
    %vm49 = vcmask 1043456
    %v50 = vsel %vm49, %v41, 0.0
    %v51 = vsel %vm49, %v45, 0.0
    %v52 = vadd.f32 %v50, %v51
    %53 = vadd.xlane.f32.xlu0 %v52
    %v54 = vpop.xlane.xlu0 %53
    %v55 = vsel %vm49, %v42, 0.0
    %v56 = vsel %vm49, %v46, 0.0
    %v57 = vadd.f32 %v55, %v56
    %58 = vadd.xlane.f32.xlu0 %v57
    %v59 = vpop.xlane.xlu0 %58
    %v60 = vld [vmem:[#allocation5] sm:$0xf]
    %v61 = vld [vmem:[%s2] sm:$0x1]
    %v63 = vlaneseq
    %v64 = vshrl.u32 %v63, 7
    %v65 = vsub.s32 0, %v64
    %v66 = vrot.slane %v61, %v65
    %v70 = vlaneseq
    %v71 = vand.u32 %v70, 127
    %v72 = vlaneseq
    %v73 = vshrl.u32 %v72, 7
    %v74 = vsub.s32 %v71, %v73
    %v75 = vrot.slane %v54, %v74
    %v76 = vlaneseq
    %v77 = vshrl.u32 %v76, 7
    %v78 = vsub.s32 %v71, %v77
    %v79 = vrot.slane %v59, %v78
    %vm80 = vcmask 1041409
    %v81 = vsel %vm80, %v79, %v75
    %vm82 = vcmask 31744
    %v83 = vsel %vm82, %v81, 0
    %v86 = vsel %vm49, %v60, 0
    %88 = vmatprep.subr.mxu0 0.0
    %89 = vmatpush1.msra.mxu0 0.0
    %90 = vmatprep.subr.mxu0 0.0
    %91 = vmatpush1.msra.mxu0 0.0
    %92 = vmatprep.subr.mxu0 0.0
    %93 = vmatpush1.msra.mxu0 0.0
    %94 = vmatprep.subr.mxu0 0.0
    %95 = vmatpush1.msra.mxu0 0.0
    %96 = vmatprep.subr.mxu0 0.0
    %97 = vmatpush1.msra.mxu0 0.0
    %98 = vmatprep.subr.mxu0 0.0
    %99 = vmatpush1.msra.mxu0 0.0
    %100 = vmatprep.subr.mxu0 0.0
    %101 = vmatpush1.msra.mxu0 0.0
    %102 = vmatprep.subr.mxu0 0.0
    %103 = vmatpush1.msra.mxu0 0.0
    %104 = vmatprep.subr.mxu0 0.0
    %105 = vmatpush1.msra.mxu0 0.0
    %106 = vmatprep.subr.mxu0 0.0
    %107 = vmatpush1.msra.mxu0 0.0
    %108 = vmatprep.subr.mxu0 0.0
    %109 = vmatpush1.msra.mxu0 0.0
    %110 = vmatprep.subr.mxu0 0.0
    %111 = vmatpush1.msra.mxu0 0.0
    %112 = vmatprep.subr.mxu0 0.0
    %113 = vmatpush1.msra.mxu0 0.0
    %114 = vmatprep.subr.mxu0 0.0
    %115 = vmatpush1.msra.mxu0 0.0
    %116 = vmatprep.subr.mxu0 0.0
    %117 = vmatpush1.msra.mxu0 0.0
    %118 = vmatprep.subr.mxu0 0.0
    %119 = vmatpush1.msra.mxu0 %v86
    %120 = vmatprep.subr.mxu0 0.0
    %121 = vmatpush2.msra.mxu0 0.0
    %122 = vmatprep.subr.mxu0 0.0
    %123 = vmatpush2.msra.mxu0 0.0
    %124 = vmatprep.subr.mxu0 0.0
    %125 = vmatpush2.msra.mxu0 0.0
    %126 = vmatprep.subr.mxu0 0.0
    %127 = vmatpush2.msra.mxu0 0.0
    %128 = vmatprep.subr.mxu0 0.0
    %129 = vmatpush2.msra.mxu0 0.0
    %130 = vmatprep.subr.mxu0 0.0
    %131 = vmatpush2.msra.mxu0 0.0
    %132 = vmatprep.subr.mxu0 0.0
    %133 = vmatpush2.msra.mxu0 0.0
    %134 = vmatprep.subr.mxu0 0.0
    %135 = vmatpush2.msra.mxu0 0.0
    %136 = vmatprep.subr.mxu0 0.0
    %137 = vmatpush2.msra.mxu0 0.0
    %138 = vmatprep.subr.mxu0 0.0
    %139 = vmatpush2.msra.mxu0 0.0
    %140 = vmatprep.subr.mxu0 0.0
    %141 = vmatpush2.msra.mxu0 0.0
    %142 = vmatprep.subr.mxu0 0.0
    %143 = vmatpush2.msra.mxu0 0.0
    %144 = vmatprep.subr.mxu0 0.0
    %145 = vmatpush2.msra.mxu0 0.0
    %146 = vmatprep.subr.mxu0 0.0
    %147 = vmatpush2.msra.mxu0 0.0
    %148 = vmatprep.subr.mxu0 0.0
    %149 = vmatpush2.msra.mxu0 0.0
    %150 = vmatprep.subr.mxu0 0.0
    %151 = vmatpush2.msra.mxu0 0.0
    %152 = vmatprep.mubr.f32.mxu0 0.0
    %153 = vmatmul.mubr.f32.gmra.mxu0 %v83
    %v154 = vpop.f32.mrf.mxu0
    %v155 = vadd.f32 %v66, %v154
    %v156 = vpop.f32.mrf.mxu0
    %157 = vdwg.mxu0
    %vm158 = vcmask 58368
    %159 = vst.msk [vmem:[#allocation7] sm:$0x3] %vm158, %v155
    // Predicated region
    $region22: #{tpu_custom_call.1} parent=1 // pred_check
      _
    $region23: #{tpu_custom_call.1} parent=1 // pred_check_branch
      %161 = sbr.rel (0) target = $region25
    $region24: #{tpu_custom_call.1} parent=1 // pred_region
      %s163 = ssub.s32 32, 32
      %164 = vsyncadd [#allocation4], %s163
      %s166 = sshll.u32 [#allocation7], 4
      %s167 = int_to_ptr.vmem [resolvable:$true] %s166
      %169 = dma.vmem_to_hbm [thread:$0]  %s167, 32, %s3, [#allocation4]
    $region25: #{tpu_custom_call.1} parent=1 // pred_fallthru
      _
    // Predicated region
    $region26: #{tpu_custom_call.1} parent=1 // pred_check
      _
    $region27: #{tpu_custom_call.1} parent=1 // pred_check_branch
      %171 = sbr.rel (0) target = $region29
    $region28: #{tpu_custom_call.1} parent=1 // pred_region
      %172 = dma.done [#allocation4], 32
    $region29: #{tpu_custom_call.1} parent=1 // pred_fallthru
      _
    %173 = vsyncpa [#allocation3], 1
    %174 = vsyncpa [#allocation6], 1
    %175 = vsyncpa [#allocation4], 1

</llo_original>
